<compile_context>
chip_gen: v7x
topology: tpu7x:2x2x1
jax: 0.10.0
libtpu: 0.0.40
codegen_flags: <defaults>
</compile_context>

<pallas_src>
import jax
import jax.numpy as jnp
from jax.experimental import pallas as pl
from jax.experimental.pallas import tpu as pltpu


def _round_up(x, m):
    return ((x + m - 1) // m) * m


# ---------------------------------------------------------------------------
# Pallas kernel: out = x @ Wa + u @ Wb   (f32 MXU dots, f32 accumulate).
# ---------------------------------------------------------------------------
def _koopman_kernel(x_ref, u_ref, wa_ref, wb_ref, o_ref):
    # x_ref : (TM, D)  f32   activation tile (latent state)
    # u_ref : (TM, U)  f32   activation tile (control input)
    # wa_ref: (D,  D)  f32   A.weight.T (pre-transposed, VMEM-resident)
    # wb_ref: (U,  D)  f32   B.weight.T (pre-transposed, VMEM-resident)
    # o_ref : (TM, D)  f32
    o_ref[...] = (
        jnp.dot(x_ref[...], wa_ref[...], preferred_element_type=jnp.float32)
        + jnp.dot(u_ref[...], wb_ref[...], preferred_element_type=jnp.float32)
    )


# ---------------------------------------------------------------------------
# One-time parameter preparation: transpose to (in, out) layout, keep f32.
# ---------------------------------------------------------------------------
def prepare_params(a_weight, b_weight):
    """a_weight: (D, D), b_weight: (D, U) in nn.Linear (out, in) layout."""
    wa = jnp.asarray(a_weight, jnp.float32).T   # (D, D)
    wb = jnp.asarray(b_weight, jnp.float32).T   # (U, D)
    return wa, wb


# ---------------------------------------------------------------------------
# Forward wrapper: one pallas_call, no padding buffers, no output slice.
# ---------------------------------------------------------------------------
@jax.jit
def koopman_forward(x, u, wa, wb):
    """KoopmanPredict.forward(x, u) = x @ A.weight.T + u @ B.weight.T."""
    B, D = x.shape
    U = u.shape[1]

    # M tiling:
    #   tiny batch  -> single full-extent tile
    #   medium      -> 2 tiles (both v7x TensorCores engage on the M axis)
    #   large       -> 1024-row tiles; partial last tile handled by Pallas
    if B <= 8:
        TM = B
    elif B <= 2048:
        TM = _round_up(pl.cdiv(B, 2), 8)
    else:
        TM = 1024
    grid_m = pl.cdiv(B, TM)

    x32 = x.astype(jnp.float32)
    u32 = u.astype(jnp.float32)

    return pl.pallas_call(
        _koopman_kernel,
        out_shape=jax.ShapeDtypeStruct((B, D), jnp.float32),
        grid=(grid_m,),
        in_specs=[
            # Activation tiles: vary with the M tile; last dims are full-extent
            # (D=40, U=4) so no (8,128) padding and no wasted HBM bytes.
            pl.BlockSpec((TM, D), lambda i: (i, 0)),
            pl.BlockSpec((TM, U), lambda i: (i, 0)),
            # Weights: constant block index -> DMA'd once, VMEM-resident.
            pl.BlockSpec((D, D), lambda i: (0, 0)),
            pl.BlockSpec((U, D), lambda i: (0, 0)),
        ],
        out_specs=pl.BlockSpec((TM, D), lambda i: (i, 0)),
        compiler_params=pltpu.CompilerParams(
            dimension_semantics=("parallel",),
        ),
    )(x32, u32, wa, wb)


# ---------------------------------------------------------------------------
# Deterministic parameter construction (shapes follow the module __init__).
# ---------------------------------------------------------------------------
def make_raw_params(key, x_dim, u_dim, z_dim):
    q_dim = x_dim // 2
    lat_dim = x_dim + z_dim + 2 * q_dim          # A's input/output dim
    k_a, k_b = jax.random.split(key, 2)
    # nn.Linear default init: U(-1/sqrt(fan_in), 1/sqrt(fan_in))
    a_bound = 1.0 / jnp.sqrt(lat_dim)
    b_bound = 1.0 / jnp.sqrt(u_dim)
    a_weight = jax.random.uniform(
        k_a, (lat_dim, lat_dim), jnp.float32, -a_bound, a_bound)
    b_weight = jax.random.uniform(
        k_b, (lat_dim, u_dim), jnp.float32, -b_bound, b_bound)
    return a_weight, b_weight, lat_dim


if __name__ == "__main__":
    # Small, module-consistent shapes.
    x_dim, u_dim, z_dim, hid_units = 16, 4, 8, 32
    batch = 2

    key = jax.random.PRNGKey(0)
    k_params, k_x, k_u, k_x2, k_u2 = jax.random.split(key, 5)

    a_weight, b_weight, lat_dim = make_raw_params(k_params, x_dim, u_dim, z_dim)
    wa, wb = prepare_params(a_weight, b_weight)

    # x is the encoder's latent output: (batch, x_dim + z_dim + 2*q_dim) = (2, 40)
    x = jax.random.normal(k_x, (batch, lat_dim), jnp.float32)
    u = jax.random.normal(k_u, (batch, u_dim), jnp.float32)

    out = koopman_forward(x, u, wa, wb)
    out = jax.block_until_ready(out)
    assert out.shape == (batch, lat_dim)

    # Full f32 PyTorch-equivalent reference (tight tolerance: f32 math now).
    ref = x @ a_weight.T + u @ b_weight.T
    assert jnp.allclose(out, ref, atol=1e-5, rtol=1e-5), \
        "mismatch vs f32 reference (small batch)"

    # Exercise the multi-tile / partial-last-tile path with a larger,
    # non-multiple-of-8 batch.
    batch2 = 300
    x2 = jax.random.normal(k_x2, (batch2, lat_dim), jnp.float32)
    u2 = jax.random.normal(k_u2, (batch2, u_dim), jnp.float32)
    out2 = jax.block_until_ready(koopman_forward(x2, u2, wa, wb))
    ref2 = x2 @ a_weight.T + u2 @ b_weight.T
    assert out2.shape == (batch2, lat_dim)
    assert jnp.allclose(out2, ref2, atol=1e-5, rtol=1e-5), \
        "mismatch vs f32 reference (large batch / partial tile)"

    print("KERNEL_OK")
</pallas_src>

<mosaic_0001>
module attributes {stable_mosaic.version = 11 : i64} {
  func.func @_koopman_kernel(%arg0: i32, %arg1: memref<2x40xf32, #tpu.memory_space<vmem>>, %arg2: memref<2x4xf32, #tpu.memory_space<vmem>>, %arg3: memref<40x40xf32, #tpu.memory_space<vmem>>, %arg4: memref<4x40xf32, #tpu.memory_space<vmem>>, %arg5: memref<2x40xf32, #tpu.memory_space<vmem>>) attributes {dimension_semantics = [#tpu.dimension_semantics<parallel>], iteration_bounds = array<i64: 1>, scalar_prefetch = 0 : i64, scratch_operands = 0 : i64, tpu.core_type = #tpu.core_type<tc>, window_params = [{transform_indices = @transform_0, window_bounds = array<i64: 2, 40>}, {transform_indices = @transform_1, window_bounds = array<i64: 2, 4>}, {pipeline_mode = #tpu.pipeline_mode<synchronous>, transform_indices = @transform_2, window_bounds = array<i64: 40, 40>}, {pipeline_mode = #tpu.pipeline_mode<synchronous>, transform_indices = @transform_3, window_bounds = array<i64: 4, 40>}, {transform_indices = @transform_4, window_bounds = array<i64: 2, 40>}]} {
    %c0 = arith.constant 0 : index
    %c0_0 = arith.constant 0 : index
    %0 = vector.load %arg1[%c0, %c0_0] : memref<2x40xf32, #tpu.memory_space<vmem>>, vector<2x40xf32>
    %c0_1 = arith.constant 0 : index
    %c0_2 = arith.constant 0 : index
    %1 = vector.load %arg3[%c0_1, %c0_2] : memref<40x40xf32, #tpu.memory_space<vmem>>, vector<40x40xf32>
    %cst = arith.constant dense<0.000000e+00> : vector<2x40xf32>
    %2 = tpu.matmul %0, %1, %cst {dimension_numbers = #tpu.dot_dimension_numbers<[1], [0], [0], [1], [0, 0, 1, 1], [], []>} : vector<2x40xf32>, vector<40x40xf32>, vector<2x40xf32> -> vector<2x40xf32>
    %c0_3 = arith.constant 0 : index
    %c0_4 = arith.constant 0 : index
    %3 = vector.load %arg2[%c0_3, %c0_4] : memref<2x4xf32, #tpu.memory_space<vmem>>, vector<2x4xf32>
    %c0_5 = arith.constant 0 : index
    %c0_6 = arith.constant 0 : index
    %4 = vector.load %arg4[%c0_5, %c0_6] : memref<4x40xf32, #tpu.memory_space<vmem>>, vector<4x40xf32>
    %cst_7 = arith.constant dense<0.000000e+00> : vector<2x40xf32>
    %5 = tpu.matmul %3, %4, %cst_7 {dimension_numbers = #tpu.dot_dimension_numbers<[1], [0], [0], [1], [0, 0, 1, 1], [], []>} : vector<2x4xf32>, vector<4x40xf32>, vector<2x40xf32> -> vector<2x40xf32>
    %6 = arith.addf %2, %5 : vector<2x40xf32>
    %c0_8 = arith.constant 0 : index
    %c0_9 = arith.constant 0 : index
    %7 = vector.load %arg5[%c0_8, %c0_9] : memref<2x40xf32, #tpu.memory_space<vmem>>, vector<2x40xf32>
    tpu.vector_store %arg5[%c0_8, %c0_9], %6 {strides = array<i32>} : memref<2x40xf32, #tpu.memory_space<vmem>>, vector<2x40xf32>,
    return
  }
  func.func @transform_0(%arg0: i32) -> (i32, i32) {
    %c0_i32 = arith.constant 0 : i32
    %c0_i32_0 = arith.constant 0 : i32
    return %arg0, %c0_i32 : i32, i32
  }
  func.func @transform_1(%arg0: i32) -> (i32, i32) {
    %c0_i32 = arith.constant 0 : i32
    %c0_i32_0 = arith.constant 0 : i32
    return %arg0, %c0_i32 : i32, i32
  }
  func.func @transform_2(%arg0: i32) -> (i32, i32) {
    %c0_i32 = arith.constant 0 : i32
    %c0_i32_0 = arith.constant 0 : i32
    %c0_i32_1 = arith.constant 0 : i32
    return %c0_i32, %c0_i32_0 : i32, i32
  }
  func.func @transform_3(%arg0: i32) -> (i32, i32) {
    %c0_i32 = arith.constant 0 : i32
    %c0_i32_0 = arith.constant 0 : i32
    %c0_i32_1 = arith.constant 0 : i32
    return %c0_i32, %c0_i32_0 : i32, i32
  }
  func.func @transform_4(%arg0: i32) -> (i32, i32) {
    %c0_i32 = arith.constant 0 : i32
    %c0_i32_0 = arith.constant 0 : i32
    return %arg0, %c0_i32 : i32, i32
  }
}

</mosaic_0001>

<llo_original>
// kernel: koopman_forward.1
$region0: #{koopman_forward.1}
  #allocation0 [shape = 'u32[]', space=smem, size = 0x4, offset = 0x4, fixed_abs, tag = 'smem constant byte address 0x4 - core index']
  #allocation1 [shape = 'u32[144,128]{1,0:T(1,128)}', space=vmem, size = 0x12000, scoped, tag = 'internal scratch']
  %s0 = inlined_call_operand.hbm [shape: f32[2,40], index: 0, kind: input, shape index: {}]
  %s1 = inlined_call_operand.vmem [shape: f32[2,4], index: 1, kind: input, shape index: {}]
  %s2 = inlined_call_operand.hbm [shape: f32[40,40], index: 2, kind: input, shape index: {}]
  %s3 = inlined_call_operand.vmem [shape: f32[4,40], index: 3, kind: input, shape index: {}]
  %s4 = inlined_call_operand.hbm [shape: f32[2,40], index: 4, kind: output, shape index: {}]
  %s5 = sld [smem:[#allocation0]]
  $region34: #{koopman_forward.1} parent=0
    _
  %s7 = ssub.s32 1, %s5
  %s8 = scalar_select 0, %s7, %s5
  $region1: #{koopman_forward.1} parent=0
    #allocation2 [shape = 'u8[1024]{0}', space=vmem, size = 0x400, scoped, tag = 'input window, operand 0, single buffered']
    #allocation3 [shape = 's32[1]{0}', space=sflag, size = 0x4, scoped, tag = 'scoped memory for koopman_forward.1']
    #allocation4 [shape = 's32[1]{0}', space=sflag, size = 0x4, scoped, tag = 'scoped memory for koopman_forward.1']
    #allocation5 [shape = 'u8[20480]{0}', space=vmem, size = 0x5000, scoped, tag = 'input window, operand 2, single buffered']
    #allocation6 [shape = 's32[1]{0}', space=sflag, size = 0x4, scoped, tag = 'scoped memory for koopman_forward.1']
    #allocation7 [shape = 'u8[1024]{0}', space=vmem, size = 0x400, scoped, tag = 'output window, operand 0, single buffered']
    %9 = vsyncpa [#allocation3], 0
    %10 = vsyncpa [#allocation6], 0
    %11 = vsyncpa [#allocation4], 0
    // Predicated region
    $region2: #{koopman_forward.1} parent=1 // pred_check
      _
    $region3: #{koopman_forward.1} parent=1 // pred_check_branch
      %13 = sbr.rel (0) target = $region5
    $region4: #{koopman_forward.1} parent=1 // pred_region
      %s15 = ssub.s32 32, 32
      %16 = vsyncadd [#allocation3], %s15
      %s18 = sshll.u32 [#allocation2], 4
      %s19 = int_to_ptr.vmem [resolvable:$true] %s18
      %21 = dma.hbm_to_vmem [thread:$0]  %s0, 32, %s19, [#allocation3]
    $region5: #{koopman_forward.1} parent=1 // pred_fallthru
      _
    // Predicated region
    $region6: #{koopman_forward.1} parent=1 // pred_check
      _
    $region7: #{koopman_forward.1} parent=1 // pred_check_branch
      %23 = sbr.rel (0) target = $region9
    $region8: #{koopman_forward.1} parent=1 // pred_region
      _
    $region9: #{koopman_forward.1} parent=1 // pred_fallthru
      _
    // Predicated region
    $region10: #{koopman_forward.1} parent=1 // pred_check
      _
    $region11: #{koopman_forward.1} parent=1 // pred_check_branch
      %25 = sbr.rel (0) target = $region13
    $region12: #{koopman_forward.1} parent=1 // pred_region
      %s27 = ssub.s32 640, 640
      %28 = vsyncadd [#allocation6], %s27
      %s29 = sshll.u32 [#allocation5], 4
      %s30 = int_to_ptr.vmem [resolvable:$true] %s29
      %35 = dma.hbm_to_vmem [thread:$0]  %s2, 640, %s30, [#allocation6], 128, 128, 8
    $region13: #{koopman_forward.1} parent=1 // pred_fallthru
      _
    // Predicated region
    $region14: #{koopman_forward.1} parent=1 // pred_check
      _
    $region15: #{koopman_forward.1} parent=1 // pred_check_branch
      %37 = sbr.rel (0) target = $region17
    $region16: #{koopman_forward.1} parent=1 // pred_region
      _
    $region17: #{koopman_forward.1} parent=1 // pred_fallthru
      _
    // Predicated region
    $region18: #{koopman_forward.1} parent=1 // pred_check
      _
    $region19: #{koopman_forward.1} parent=1 // pred_check_branch
      %39 = sbr.rel (0) target = $region21
    $region20: #{koopman_forward.1} parent=1 // pred_region
      %40 = dma.done [#allocation3], 32
    $region21: #{koopman_forward.1} parent=1 // pred_fallthru
      _
    // Predicated region
    $region22: #{koopman_forward.1} parent=1 // pred_check
      _
    $region23: #{koopman_forward.1} parent=1 // pred_check_branch
      %42 = sbr.rel (0) target = $region25
    $region24: #{koopman_forward.1} parent=1 // pred_region
      %43 = dma.done [#allocation6], 640
    $region25: #{koopman_forward.1} parent=1 // pred_fallthru
      _
    %v44 = vld [vmem:[#allocation2] sm:$0x3]
    %v45 = vld [vmem:[#allocation5] sm:$0xff]
    %v46 = vld [vmem:[#allocation5 + $0x8] sm:$0xff]
    %v47 = vld [vmem:[#allocation5 + $0x10] sm:$0xff]
    %v48 = vld [vmem:[#allocation5 + $0x18] sm:$0xff]
    %v49 = vld [vmem:[#allocation5 + $0x20] sm:$0xff]
    %v50 = vld [vmem:[%s1] sm:$0x3]
    %v51 = vld [vmem:[%s3] sm:$0xf]
    %vm52 = vcmask 31744
    %v54 = vsel %vm52, %v50, 0
    %vm56 = vcmask 1043456
    %v58 = vsel %vm56, %v51, 0
    %60 = vmatprep.subr.mxu0 0.0
    %61 = vmatpush1.msra.mxu0 %v58
    %62 = vmatprep.subr.mxu0 0.0
    %63 = vmatpush1.msra.mxu0 0.0
    %64 = vmatprep.subr.mxu0 0.0
    %65 = vmatpush1.msra.mxu0 0.0
    %66 = vmatprep.subr.mxu0 0.0
    %67 = vmatpush1.msra.mxu0 0.0
    %68 = vmatprep.subr.mxu0 0.0
    %69 = vmatpush1.msra.mxu0 0.0
    %70 = vmatprep.subr.mxu0 0.0
    %71 = vmatpush1.msra.mxu0 0.0
    %72 = vmatprep.subr.mxu0 0.0
    %73 = vmatpush1.msra.mxu0 0.0
    %74 = vmatprep.subr.mxu0 0.0
    %75 = vmatpush1.msra.mxu0 0.0
    %76 = vmatprep.subr.mxu0 0.0
    %77 = vmatpush1.msra.mxu0 0.0
    %78 = vmatprep.subr.mxu0 0.0
    %79 = vmatpush1.msra.mxu0 0.0
    %80 = vmatprep.subr.mxu0 0.0
    %81 = vmatpush1.msra.mxu0 0.0
    %82 = vmatprep.subr.mxu0 0.0
    %83 = vmatpush1.msra.mxu0 0.0
    %84 = vmatprep.subr.mxu0 0.0
    %85 = vmatpush1.msra.mxu0 0.0
    %86 = vmatprep.subr.mxu0 0.0
    %87 = vmatpush1.msra.mxu0 0.0
    %88 = vmatprep.subr.mxu0 0.0
    %89 = vmatpush1.msra.mxu0 0.0
    %90 = vmatprep.subr.mxu0 0.0
    %91 = vmatpush1.msra.mxu0 0.0
    %92 = vmatprep.subr.mxu0 0.0
    %93 = vmatpush1.msra.mxu0 0.0
    %94 = vmatprep.subr.mxu0 0.0
    %95 = vmatpush1.msra.mxu0 0.0
    %96 = vmatprep.subr.mxu0 0.0
    %97 = vmatpush1.msra.mxu0 0.0
    %98 = vmatprep.subr.mxu0 0.0
    %99 = vmatpush1.msra.mxu0 0.0
    %100 = vmatprep.subr.mxu0 0.0
    %101 = vmatpush1.msra.mxu0 0.0
    %102 = vmatprep.subr.mxu0 0.0
    %103 = vmatpush1.msra.mxu0 0.0
    %104 = vmatprep.subr.mxu0 0.0
    %105 = vmatpush1.msra.mxu0 0.0
    %106 = vmatprep.subr.mxu0 0.0
    %107 = vmatpush1.msra.mxu0 0.0
    %108 = vmatprep.subr.mxu0 0.0
    %109 = vmatpush1.msra.mxu0 0.0
    %110 = vmatprep.subr.mxu0 0.0
    %111 = vmatpush1.msra.mxu0 0.0
    %112 = vmatprep.subr.mxu0 0.0
    %113 = vmatpush1.msra.mxu0 0.0
    %114 = vmatprep.subr.mxu0 0.0
    %115 = vmatpush1.msra.mxu0 0.0
    %116 = vmatprep.subr.mxu0 0.0
    %117 = vmatpush1.msra.mxu0 0.0
    %118 = vmatprep.subr.mxu0 0.0
    %119 = vmatpush1.msra.mxu0 0.0
    %120 = vmatprep.subr.mxu0 0.0
    %121 = vmatpush1.msra.mxu0 0.0
    %122 = vmatprep.subr.mxu0 0.0
    %123 = vmatpush1.msra.mxu0 0.0
    %124 = vmatprep.mubr.f32.mxu0 0.0
    %125 = vmatmul.mubr.f32.gmra.mrb[0].mxu0 %v54
    %v126 = vpop.f32.mrb[0].mxu0
    %v127 = vadd.f32 0.0, %v126
    %v128 = vpop.f32.mrb[0].mxu0
    %129 = vdwg.mxu0
    %vm130 = vcmask 326656
    %v132 = vsel %vm130, %v44, 0
    %134 = vmatprep.subr.mxu0 0.0
    %135 = vmatpush1.msra.mxu0 %v45
    %136 = vmatprep.subr.mxu0 0.0
    %137 = vmatpush1.msra.mxu0 %v46
    %138 = vmatprep.subr.mxu0 0.0
    %139 = vmatpush1.msra.mxu0 %v47
    %140 = vmatprep.subr.mxu0 0.0
    %141 = vmatpush1.msra.mxu0 %v48
    %142 = vmatprep.subr.mxu0 0.0
    %143 = vmatpush1.msra.mxu0 %v49
    %144 = vmatprep.subr.mxu0 0.0
    %145 = vmatpush1.msra.mxu0 0.0
    %146 = vmatprep.subr.mxu0 0.0
    %147 = vmatpush1.msra.mxu0 0.0
    %148 = vmatprep.subr.mxu0 0.0
    %149 = vmatpush1.msra.mxu0 0.0
    %150 = vmatprep.subr.mxu0 0.0
    %151 = vmatpush1.msra.mxu0 0.0
    %152 = vmatprep.subr.mxu0 0.0
    %153 = vmatpush1.msra.mxu0 0.0
    %154 = vmatprep.subr.mxu0 0.0
    %155 = vmatpush1.msra.mxu0 0.0
    %156 = vmatprep.subr.mxu0 0.0
    %157 = vmatpush1.msra.mxu0 0.0
    %158 = vmatprep.subr.mxu0 0.0
    %159 = vmatpush1.msra.mxu0 0.0
    %160 = vmatprep.subr.mxu0 0.0
    %161 = vmatpush1.msra.mxu0 0.0
    %162 = vmatprep.subr.mxu0 0.0
    %163 = vmatpush1.msra.mxu0 0.0
    %164 = vmatprep.subr.mxu0 0.0
    %165 = vmatpush1.msra.mxu0 0.0
    %166 = vmatprep.subr.mxu0 0.0
    %167 = vmatpush1.msra.mxu0 0.0
    %168 = vmatprep.subr.mxu0 0.0
    %169 = vmatpush1.msra.mxu0 0.0
    %170 = vmatprep.subr.mxu0 0.0
    %171 = vmatpush1.msra.mxu0 0.0
    %172 = vmatprep.subr.mxu0 0.0
    %173 = vmatpush1.msra.mxu0 0.0
    %174 = vmatprep.subr.mxu0 0.0
    %175 = vmatpush1.msra.mxu0 0.0
    %176 = vmatprep.subr.mxu0 0.0
    %177 = vmatpush1.msra.mxu0 0.0
    %178 = vmatprep.subr.mxu0 0.0
    %179 = vmatpush1.msra.mxu0 0.0
    %180 = vmatprep.subr.mxu0 0.0
    %181 = vmatpush1.msra.mxu0 0.0
    %182 = vmatprep.subr.mxu0 0.0
    %183 = vmatpush1.msra.mxu0 0.0
    %184 = vmatprep.subr.mxu0 0.0
    %185 = vmatpush1.msra.mxu0 0.0
    %186 = vmatprep.subr.mxu0 0.0
    %187 = vmatpush1.msra.mxu0 0.0
    %188 = vmatprep.subr.mxu0 0.0
    %189 = vmatpush1.msra.mxu0 0.0
    %190 = vmatprep.subr.mxu0 0.0
    %191 = vmatpush1.msra.mxu0 0.0
    %192 = vmatprep.subr.mxu0 0.0
    %193 = vmatpush1.msra.mxu0 0.0
    %194 = vmatprep.subr.mxu0 0.0
    %195 = vmatpush1.msra.mxu0 0.0
    %196 = vmatprep.subr.mxu0 0.0
    %197 = vmatpush1.msra.mxu0 0.0
    %198 = vmatprep.mubr.f32.mxu0 0.0
    %199 = vmatmul.mubr.f32.gmra.mrb[0].mxu0 %v132
    %v200 = vpop.f32.mrb[0].mxu0
    %v201 = vadd.f32 %v127, %v200
    %v202 = vpop.f32.mrb[0].mxu0
    %203 = vdwg.mxu0
    %vm204 = vcmask 320512
    %205 = vst.msk [vmem:[#allocation7] sm:$0x3] %vm204, %v201
    // Predicated region
    $region26: #{koopman_forward.1} parent=1 // pred_check
      _
    $region27: #{koopman_forward.1} parent=1 // pred_check_branch
      %207 = sbr.rel (0) target = $region29
    $region28: #{koopman_forward.1} parent=1 // pred_region
      %s209 = ssub.s32 32, 32
      %210 = vsyncadd [#allocation4], %s209
      %s212 = sshll.u32 [#allocation7], 4
      %s213 = int_to_ptr.vmem [resolvable:$true] %s212
      %215 = dma.vmem_to_hbm [thread:$0]  %s213, 32, %s4, [#allocation4]
    $region29: #{koopman_forward.1} parent=1 // pred_fallthru
      _
    // Predicated region
    $region30: #{koopman_forward.1} parent=1 // pred_check
      _
    $region31: #{koopman_forward.1} parent=1 // pred_check_branch
      %217 = sbr.rel (0) target = $region33
    $region32: #{koopman_forward.1} parent=1 // pred_region
      %218 = dma.done [#allocation4], 32
    $region33: #{koopman_forward.1} parent=1 // pred_fallthru
      _
    %219 = vsyncpa [#allocation3], 1
    %220 = vsyncpa [#allocation6], 1
    %221 = vsyncpa [#allocation4], 1

</llo_original>
